<compile_context>
chip_gen: v6e
topology: v6e:2x2x1
jax: 0.10.0
libtpu: 0.0.40
codegen_flags: <defaults>
</compile_context>

<pallas_src>
import functools
import math

import jax
import jax.numpy as jnp
from jax import lax
from jax.experimental import pallas as pl
from jax.experimental.pallas import tpu as pltpu


_NEG_INF = -1e30  # large finite negative: keeps exp()/max() free of inf-inf NaNs


# ------------------- Fused kernel: QKV + causal flash attn + out_proj ---------
def _fused_mha_kernel(x_ref, wq_ref, wkv_ref, wout_ref, b_ref, o_ref,
                      *, num_heads, d_out, tq, tk):
    # x_ref:    (1, T, d_in)      full sequence of current batch element (VMEM-resident)
    # wq_ref:   (d_in, H*d_out)   bf16 packed per-head Q weights, softmax scale folded in
    # wkv_ref:  (d_in, 2*H*d_out) bf16 packed [K | V] per-head weights
    # wout_ref: (H*d_out, D)      bf16 out_proj weight (transposed: y = ctx @ W)
    # b_ref:    (1, D)            f32 out_proj bias
    # o_ref:    (1, tq, D)        output tile for the current query block
    qi = pl.program_id(1)
    HD = num_heads * d_out

    # ---- Q projection for this query tile: one MXU matmul for all heads. ----
    q_start = pl.multiple_of(qi * tq, tq)
    xq = x_ref[0, pl.ds(q_start, tq), :].astype(jnp.bfloat16)            # (tq, d_in)
    q = jnp.dot(xq, wq_ref[...],
                preferred_element_type=jnp.float32).astype(jnp.bfloat16)  # (tq, HD)

    row_ids = qi * tq + lax.broadcasted_iota(jnp.int32, (tq, tk), 0)

    # ---- Online-softmax running state per head (m, l, acc). ----
    init = []
    for _ in range(num_heads):
        init.append(jnp.full((tq, 1), _NEG_INF, jnp.float32))   # running max
        init.append(jnp.zeros((tq, 1), jnp.float32))            # running denom
        init.append(jnp.zeros((tq, d_out), jnp.float32))        # running numerator
    init = tuple(init)

    def kv_step(j, carry):
        k_start = pl.multiple_of(j * tk, tk)
        xk = x_ref[0, pl.ds(k_start, tk), :].astype(jnp.bfloat16)        # (tk, d_in)
        kv = jnp.dot(xk, wkv_ref[...],
                     preferred_element_type=jnp.float32).astype(jnp.bfloat16)  # (tk, 2HD)
        col_ids = j * tk + lax.broadcasted_iota(jnp.int32, (tq, tk), 1)
        future = col_ids > row_ids                                        # causal mask

        new_carry = []
        for h in range(num_heads):                     # static, unrolled at trace time
            m_h, l_h, a_h = carry[3 * h], carry[3 * h + 1], carry[3 * h + 2]
            q_h = q[:, h * d_out:(h + 1) * d_out]
            k_h = kv[:, h * d_out:(h + 1) * d_out]
            v_h = kv[:, HD + h * d_out:HD + (h + 1) * d_out]

            # scores = q_h @ k_h^T: contract last dims (no transpose materialized)
            s = lax.dot_general(q_h, k_h, (((1,), (1,)), ((), ())),
                                preferred_element_type=jnp.float32)       # (tq, tk)
            s = jnp.where(future, _NEG_INF, s)

            m_new = jnp.maximum(m_h, jnp.max(s, axis=-1, keepdims=True))
            alpha = jnp.exp(m_h - m_new)
            p = jnp.exp(s - m_new)
            l_new = alpha * l_h + jnp.sum(p, axis=-1, keepdims=True)
            a_new = alpha * a_h + jnp.dot(p.astype(jnp.bfloat16), v_h,
                                          preferred_element_type=jnp.float32)
            new_carry += [m_new, l_new, a_new]
        return tuple(new_carry)

    # Causal block skipping: only KV tiles j <= qi contribute to this query tile.
    carry = lax.fori_loop(0, qi + 1, kv_step, init)

    # ---- out_proj contracted over heads (no concat / lane relayout). ----
    w_out = wout_ref[...]                                                 # (HD, D) bf16
    y = jnp.zeros((tq, HD), jnp.float32)
    for h in range(num_heads):
        l_h, a_h = carry[3 * h + 1], carry[3 * h + 2]
        ctx = a_h * pl.reciprocal(l_h, approx=False)                      # (tq, d_out)
        y = y + jnp.dot(ctx.astype(jnp.bfloat16),
                        w_out[h * d_out:(h + 1) * d_out, :],
                        preferred_element_type=jnp.float32)
    y = y + b_ref[...]
    o_ref[0] = y.astype(o_ref.dtype)


def mha_wrapper_forward(x, params):
    # x: (B, T, d_in)
    B, T, d_in = x.shape
    H = params["num_heads"]
    d_out = params["d_out"]
    D = H * d_out

    # Query tile size: full T for toy shapes, 128 otherwise.
    tq = T if T <= 128 else 128
    assert T % tq == 0, "T must be a multiple of the query tile size"
    nq = T // tq
    tk = tq

    kernel = functools.partial(_fused_mha_kernel,
                               num_heads=H, d_out=d_out, tq=tq, tk=tk)

    # TODO(synk): D = H*d_out = 32 here -> masked vst partial stores; realistic
    #             configs should use D as a multiple of 128 for lane-dense output.
    return pl.pallas_call(
        kernel,
        out_shape=jax.ShapeDtypeStruct((B, T, D), x.dtype),
        grid_spec=pltpu.PrefetchScalarGridSpec(
            num_scalar_prefetch=0,
            grid=(B, nq),
            in_specs=[
                pl.BlockSpec((1, T, d_in), lambda b, qi: (b, 0, 0)),   # x (resident / batch)
                pl.BlockSpec((d_in, D), lambda b, qi: (0, 0)),         # W_q (bf16, scaled)
                pl.BlockSpec((d_in, 2 * D), lambda b, qi: (0, 0)),     # W_kv (bf16)
                pl.BlockSpec((D, D), lambda b, qi: (0, 0)),            # W_out (bf16)
                pl.BlockSpec((1, D), lambda b, qi: (0, 0)),            # bias (f32)
            ],
            out_specs=pl.BlockSpec((1, tq, D), lambda b, qi: (b, qi, 0)),
        ),
        compiler_params=pltpu.CompilerParams(
            dimension_semantics=("parallel", "parallel"),
            vmem_limit_bytes=32 * 1024 * 1024),
    )(x, params["w_q_bf16"], params["w_kv_bf16"], params["w_out_bf16"],
      params["b_out"])


# ----------------------------- Parameters -------------------------------------
def make_params(key, d_in, d_out, num_heads, dtype=jnp.float32):
    kq, kk, kv, kw, kb = jax.random.split(key, 5)
    scale_in = 1.0 / math.sqrt(d_in)
    # Per-head projection weights, stacked (H, d_in, d_out). qkv_bias=False.
    wq = jax.random.uniform(kq, (num_heads, d_in, d_out), dtype, -scale_in, scale_in)
    wk = jax.random.uniform(kk, (num_heads, d_in, d_out), dtype, -scale_in, scale_in)
    wv = jax.random.uniform(kv, (num_heads, d_in, d_out), dtype, -scale_in, scale_in)

    def pack(w):  # (H, d_in, d_out) -> (d_in, H*d_out), head-major columns
        return jnp.transpose(w, (1, 0, 2)).reshape(d_in, num_heads * d_out)

    # Fold the 1/sqrt(d_out) softmax scale into the Q weights (free at runtime);
    # store packed weights in bf16 for the MXU / halved weight DMA.
    w_q_bf16 = (pack(wq) * (1.0 / math.sqrt(d_out))).astype(jnp.bfloat16)
    w_kv_bf16 = jnp.concatenate([pack(wk), pack(wv)], axis=-1).astype(jnp.bfloat16)

    # out_proj: Linear(H*d_out, H*d_out) with bias; store transposed weight.
    D = d_out * num_heads
    scale_d = 1.0 / math.sqrt(D)
    w_out_t = jax.random.uniform(kw, (D, D), dtype, -scale_d, scale_d)
    b_out = jax.random.uniform(kb, (1, D), dtype, -scale_d, scale_d)
    return dict(wq=wq, wk=wk, wv=wv,
                w_q_bf16=w_q_bf16, w_kv_bf16=w_kv_bf16,
                w_out_t=w_out_t, w_out_bf16=w_out_t.astype(jnp.bfloat16),
                b_out=b_out, num_heads=num_heads, d_out=d_out)


# ----------------------------- Pure-JAX reference (f32) ------------------------
def reference_forward(x, params):
    B, T, _ = x.shape
    wq, wk, wv = params["wq"], params["wk"], params["wv"]
    H, _, d_out = wq.shape
    q = jnp.einsum("btd,hde->bhte", x, wq)
    k = jnp.einsum("btd,hde->bhte", x, wk)
    v = jnp.einsum("btd,hde->bhte", x, wv)
    scores = jnp.einsum("bhqe,bhke->bhqk", q, k)
    causal = jnp.tril(jnp.ones((T, T), bool))
    scores = jnp.where(causal[None, None], scores, -jnp.inf) / math.sqrt(d_out)
    w = jax.nn.softmax(scores, axis=-1)
    ctx = jnp.einsum("bhqk,bhke->bhqe", w, v)
    ctx = jnp.transpose(ctx, (0, 2, 1, 3)).reshape(B, T, H * d_out)
    return ctx @ params["w_out_t"] + params["b_out"]


if __name__ == "__main__":
    # Small shapes consistent with the module: batch=2, seq=8, d_in=32,
    # d_out=16 per head, num_heads=2, context_length=8, dropout=0.0.
    B, T, d_in, d_out, H = 2, 8, 32, 16, 2

    key = jax.random.PRNGKey(0)
    kx, kp = jax.random.split(key)
    x = jax.random.normal(kx, (B, T, d_in), jnp.float32)
    params = make_params(kp, d_in, d_out, H)

    y = mha_wrapper_forward(x, params)
    y = jax.block_until_ready(y)

    y_ref = reference_forward(x, params)
    assert y.shape == (B, T, d_out * H)
    # bf16 MXU operands (f32 accumulation) -> small drift vs the f32 reference.
    assert jnp.allclose(y, y_ref, atol=2e-2, rtol=2e-2), "mismatch vs reference"

    print("KERNEL_OK")
</pallas_src>

<mosaic_0001>
module attributes {stable_mosaic.version = 11 : i64} {
  func.func @_fused_mha_kernel(%arg0: i32, %arg1: i32, %arg2: memref<1x8x32xf32, #tpu.memory_space<vmem>>, %arg3: memref<32x32xbf16, #tpu.memory_space<vmem>>, %arg4: memref<32x64xbf16, #tpu.memory_space<vmem>>, %arg5: memref<32x32xbf16, #tpu.memory_space<vmem>>, %arg6: memref<1x32xf32, #tpu.memory_space<vmem>>, %arg7: memref<1x8x32xf32, #tpu.memory_space<vmem>>) attributes {dimension_semantics = [#tpu.dimension_semantics<parallel>, #tpu.dimension_semantics<parallel>], iteration_bounds = array<i64: 2, 1>, scalar_prefetch = 0 : i64, scratch_operands = 0 : i64, tpu.core_type = #tpu.core_type<tc>, window_params = [{transform_indices = @transform_0, window_bounds = array<i64: 1, 8, 32>}, {pipeline_mode = #tpu.pipeline_mode<synchronous>, transform_indices = @transform_1, window_bounds = array<i64: 32, 32>}, {pipeline_mode = #tpu.pipeline_mode<synchronous>, transform_indices = @transform_2, window_bounds = array<i64: 32, 64>}, {pipeline_mode = #tpu.pipeline_mode<synchronous>, transform_indices = @transform_3, window_bounds = array<i64: 32, 32>}, {pipeline_mode = #tpu.pipeline_mode<synchronous>, transform_indices = @transform_4, window_bounds = array<i64: 1, 32>}, {transform_indices = @transform_5, window_bounds = array<i64: 1, 8, 32>}]} {
    %c8_i32 = arith.constant 8 : i32
    %0 = arith.muli %arg1, %c8_i32 : i32
    %1 = tpu.assume_multiple %0, 8 : i32
    %c0 = arith.constant 0 : index
    %2 = arith.index_cast %1 : i32 to index
    %c0_0 = arith.constant 0 : index
    %3 = vector.load %arg2[%c0, %2, %c0_0] : memref<1x8x32xf32, #tpu.memory_space<vmem>>, vector<1x8x32xf32>
    %4 = vector.shape_cast %3 : vector<1x8x32xf32> to vector<8x32xf32>
    %5 = arith.truncf %4 : vector<8x32xf32> to vector<8x32xbf16>
    %c0_1 = arith.constant 0 : index
    %c0_2 = arith.constant 0 : index
    %6 = vector.load %arg3[%c0_1, %c0_2] : memref<32x32xbf16, #tpu.memory_space<vmem>>, vector<32x32xbf16>
    %cst = arith.constant dense<0.000000e+00> : vector<8x32xf32>
    %7 = tpu.matmul %5, %6, %cst {dimension_numbers = #tpu.dot_dimension_numbers<[1], [0], [0], [1], [0, 0, 1, 1], [], []>} : vector<8x32xbf16>, vector<32x32xbf16>, vector<8x32xf32> -> vector<8x32xf32>
    %8 = arith.truncf %7 : vector<8x32xf32> to vector<8x32xbf16>
    %c8_i32_3 = arith.constant 8 : i32
    %9 = arith.muli %arg1, %c8_i32_3 : i32
    %10 = tpu.iota {dimensions = array<i32: 0>} : vector<8x8xi32>
    %11 = vector.broadcast %9 : i32 to vector<8x8xi32>
    %12 = arith.addi %11, %10 : vector<8x8xi32>
    %cst_4 = arith.constant -1.000000e+30 : f32
    %13 = vector.broadcast %cst_4 : f32 to vector<8x1xf32>
    %cst_5 = arith.constant 0.000000e+00 : f32
    %14 = vector.broadcast %cst_5 : f32 to vector<8x1xf32>
    %cst_6 = arith.constant 0.000000e+00 : f32
    %15 = vector.broadcast %cst_6 : f32 to vector<8x16xf32>
    %cst_7 = arith.constant -1.000000e+30 : f32
    %16 = vector.broadcast %cst_7 : f32 to vector<8x1xf32>
    %cst_8 = arith.constant 0.000000e+00 : f32
    %17 = vector.broadcast %cst_8 : f32 to vector<8x1xf32>
    %cst_9 = arith.constant 0.000000e+00 : f32
    %18 = vector.broadcast %cst_9 : f32 to vector<8x16xf32>
    %c1_i32 = arith.constant 1 : i32
    %19 = arith.addi %arg1, %c1_i32 : i32
    %c0_i32 = arith.constant 0 : i32
    %20 = arith.subi %19, %c0_i32 : i32
    %21 = arith.addi %c0_i32, %20 : i32
    %c1_i32_10 = arith.constant 1 : i32
    %22:6 = scf.for %arg8 = %c0_i32 to %21 step %c1_i32_10 iter_args(%arg9 = %13, %arg10 = %14, %arg11 = %15, %arg12 = %16, %arg13 = %17, %arg14 = %18) -> (vector<8x1xf32>, vector<8x1xf32>, vector<8x16xf32>, vector<8x1xf32>, vector<8x1xf32>, vector<8x16xf32>)  : i32 {
      %c8_i32_21 = arith.constant 8 : i32
      %45 = arith.muli %arg8, %c8_i32_21 : i32
      %46 = tpu.assume_multiple %45, 8 : i32
      %c0_22 = arith.constant 0 : index
      %47 = arith.index_cast %46 : i32 to index
      %c0_23 = arith.constant 0 : index
      %48 = vector.load %arg2[%c0_22, %47, %c0_23] : memref<1x8x32xf32, #tpu.memory_space<vmem>>, vector<1x8x32xf32>
      %49 = vector.shape_cast %48 : vector<1x8x32xf32> to vector<8x32xf32>
      %50 = arith.truncf %49 : vector<8x32xf32> to vector<8x32xbf16>
      %c0_24 = arith.constant 0 : index
      %c0_25 = arith.constant 0 : index
      %51 = vector.load %arg4[%c0_24, %c0_25] : memref<32x64xbf16, #tpu.memory_space<vmem>>, vector<32x64xbf16>
      %cst_26 = arith.constant dense<0.000000e+00> : vector<8x64xf32>
      %52 = tpu.matmul %50, %51, %cst_26 {dimension_numbers = #tpu.dot_dimension_numbers<[1], [0], [0], [1], [0, 0, 1, 1], [], []>} : vector<8x32xbf16>, vector<32x64xbf16>, vector<8x64xf32> -> vector<8x64xf32>
      %53 = arith.truncf %52 : vector<8x64xf32> to vector<8x64xbf16>
      %c8_i32_27 = arith.constant 8 : i32
      %54 = arith.muli %arg8, %c8_i32_27 : i32
      %55 = tpu.iota {dimensions = array<i32: 1>} : vector<8x8xi32>
      %56 = vector.broadcast %54 : i32 to vector<8x8xi32>
      %57 = arith.addi %56, %55 : vector<8x8xi32>
      %58 = arith.cmpi sgt, %57, %12 : vector<8x8xi32>
      %59 = vector.extract_strided_slice %8 {offsets = [0, 0], sizes = [8, 16], strides = [1, 1]} : vector<8x32xbf16> to vector<8x16xbf16>
      %60 = vector.extract_strided_slice %53 {offsets = [0, 0], sizes = [8, 16], strides = [1, 1]} : vector<8x64xbf16> to vector<8x16xbf16>
      %61 = vector.extract_strided_slice %53 {offsets = [0, 32], sizes = [8, 16], strides = [1, 1]} : vector<8x64xbf16> to vector<8x16xbf16>
      %cst_28 = arith.constant dense<0.000000e+00> : vector<8x8xf32>
      %62 = tpu.matmul %59, %60, %cst_28 {dimension_numbers = #tpu.dot_dimension_numbers<[1], [1], [0], [0], [0, 0, 1, 0], [], []>} : vector<8x16xbf16>, vector<8x16xbf16>, vector<8x8xf32> -> vector<8x8xf32>
      %cst_29 = arith.constant -1.000000e+30 : f32
      %63 = vector.broadcast %cst_29 : f32 to vector<8x8xf32>
      %64 = arith.select %58, %63, %62 : vector<8x8xi1>, vector<8x8xf32>
      %cst_30 = arith.constant dense<0xFF800000> : vector<8xf32>
      %65 = vector.multi_reduction <maximumf>, %64, %cst_30 [1] : vector<8x8xf32> to vector<8xf32>
      %66 = vector.shape_cast %65 : vector<8xf32> to vector<8x1xf32>
      %67 = arith.maximumf %arg9, %66 : vector<8x1xf32>
      %68 = arith.subf %arg9, %67 : vector<8x1xf32>
      %69 = math.exp %68 : vector<8x1xf32>
      %70 = vector.broadcast %67 : vector<8x1xf32> to vector<8x8xf32>
      %71 = arith.subf %64, %70 : vector<8x8xf32>
      %72 = math.exp %71 : vector<8x8xf32>
      %73 = arith.mulf %69, %arg10 : vector<8x1xf32>
      %cst_31 = arith.constant dense<0.000000e+00> : vector<8xf32>
      %74 = vector.multi_reduction <add>, %72, %cst_31 [1] : vector<8x8xf32> to vector<8xf32>
      %75 = vector.shape_cast %74 : vector<8xf32> to vector<8x1xf32>
      %76 = arith.addf %73, %75 : vector<8x1xf32>
      %77 = vector.broadcast %69 : vector<8x1xf32> to vector<8x16xf32>
      %78 = arith.mulf %77, %arg11 : vector<8x16xf32>
      %79 = arith.truncf %72 : vector<8x8xf32> to vector<8x8xbf16>
      %cst_32 = arith.constant dense<0.000000e+00> : vector<8x16xf32>
      %80 = tpu.matmul %79, %61, %cst_32 {dimension_numbers = #tpu.dot_dimension_numbers<[1], [0], [0], [1], [0, 0, 1, 1], [], []>} : vector<8x8xbf16>, vector<8x16xbf16>, vector<8x16xf32> -> vector<8x16xf32>
      %81 = arith.addf %78, %80 : vector<8x16xf32>
      %82 = vector.extract_strided_slice %8 {offsets = [0, 16], sizes = [8, 16], strides = [1, 1]} : vector<8x32xbf16> to vector<8x16xbf16>
      %83 = vector.extract_strided_slice %53 {offsets = [0, 16], sizes = [8, 16], strides = [1, 1]} : vector<8x64xbf16> to vector<8x16xbf16>
      %84 = vector.extract_strided_slice %53 {offsets = [0, 48], sizes = [8, 16], strides = [1, 1]} : vector<8x64xbf16> to vector<8x16xbf16>
      %cst_33 = arith.constant dense<0.000000e+00> : vector<8x8xf32>
      %85 = tpu.matmul %82, %83, %cst_33 {dimension_numbers = #tpu.dot_dimension_numbers<[1], [1], [0], [0], [0, 0, 1, 0], [], []>} : vector<8x16xbf16>, vector<8x16xbf16>, vector<8x8xf32> -> vector<8x8xf32>
      %cst_34 = arith.constant -1.000000e+30 : f32
      %86 = vector.broadcast %cst_34 : f32 to vector<8x8xf32>
      %87 = arith.select %58, %86, %85 : vector<8x8xi1>, vector<8x8xf32>
      %cst_35 = arith.constant dense<0xFF800000> : vector<8xf32>
      %88 = vector.multi_reduction <maximumf>, %87, %cst_35 [1] : vector<8x8xf32> to vector<8xf32>
      %89 = vector.shape_cast %88 : vector<8xf32> to vector<8x1xf32>
      %90 = arith.maximumf %arg12, %89 : vector<8x1xf32>
      %91 = arith.subf %arg12, %90 : vector<8x1xf32>
      %92 = math.exp %91 : vector<8x1xf32>
      %93 = vector.broadcast %90 : vector<8x1xf32> to vector<8x8xf32>
      %94 = arith.subf %87, %93 : vector<8x8xf32>
      %95 = math.exp %94 : vector<8x8xf32>
      %96 = arith.mulf %92, %arg13 : vector<8x1xf32>
      %cst_36 = arith.constant dense<0.000000e+00> : vector<8xf32>
      %97 = vector.multi_reduction <add>, %95, %cst_36 [1] : vector<8x8xf32> to vector<8xf32>
      %98 = vector.shape_cast %97 : vector<8xf32> to vector<8x1xf32>
      %99 = arith.addf %96, %98 : vector<8x1xf32>
      %100 = vector.broadcast %92 : vector<8x1xf32> to vector<8x16xf32>
      %101 = arith.mulf %100, %arg14 : vector<8x16xf32>
      %102 = arith.truncf %95 : vector<8x8xf32> to vector<8x8xbf16>
      %cst_37 = arith.constant dense<0.000000e+00> : vector<8x16xf32>
      %103 = tpu.matmul %102, %84, %cst_37 {dimension_numbers = #tpu.dot_dimension_numbers<[1], [0], [0], [1], [0, 0, 1, 1], [], []>} : vector<8x8xbf16>, vector<8x16xbf16>, vector<8x16xf32> -> vector<8x16xf32>
      %104 = arith.addf %101, %103 : vector<8x16xf32>
      scf.yield %67, %76, %81, %90, %99, %104 : vector<8x1xf32>, vector<8x1xf32>, vector<8x16xf32>, vector<8x1xf32>, vector<8x1xf32>, vector<8x16xf32>
    }
    %c0_11 = arith.constant 0 : index
    %c0_12 = arith.constant 0 : index
    %23 = vector.load %arg5[%c0_11, %c0_12] : memref<32x32xbf16, #tpu.memory_space<vmem>>, vector<32x32xbf16>
    %cst_13 = arith.constant 0.000000e+00 : f32
    %24 = vector.broadcast %cst_13 : f32 to vector<8x32xf32>
    %25 = tpu.reciprocal %22#1 : vector<8x1xf32> -> vector<8x1xf32>
    %26 = vector.broadcast %25 : vector<8x1xf32> to vector<8x16xf32>
    %27 = arith.mulf %22#2, %26 : vector<8x16xf32>
    %28 = arith.truncf %27 : vector<8x16xf32> to vector<8x16xbf16>
    %29 = vector.extract_strided_slice %23 {offsets = [0, 0], sizes = [16, 32], strides = [1, 1]} : vector<32x32xbf16> to vector<16x32xbf16>
    %cst_14 = arith.constant dense<0.000000e+00> : vector<8x32xf32>
    %30 = tpu.matmul %28, %29, %cst_14 {dimension_numbers = #tpu.dot_dimension_numbers<[1], [0], [0], [1], [0, 0, 1, 1], [], []>} : vector<8x16xbf16>, vector<16x32xbf16>, vector<8x32xf32> -> vector<8x32xf32>
    %31 = arith.addf %24, %30 : vector<8x32xf32>
    %32 = tpu.reciprocal %22#4 : vector<8x1xf32> -> vector<8x1xf32>
    %33 = vector.broadcast %32 : vector<8x1xf32> to vector<8x16xf32>
    %34 = arith.mulf %22#5, %33 : vector<8x16xf32>
    %35 = arith.truncf %34 : vector<8x16xf32> to vector<8x16xbf16>
    %36 = vector.extract_strided_slice %23 {offsets = [16, 0], sizes = [16, 32], strides = [1, 1]} : vector<32x32xbf16> to vector<16x32xbf16>
    %cst_15 = arith.constant dense<0.000000e+00> : vector<8x32xf32>
    %37 = tpu.matmul %35, %36, %cst_15 {dimension_numbers = #tpu.dot_dimension_numbers<[1], [0], [0], [1], [0, 0, 1, 1], [], []>} : vector<8x16xbf16>, vector<16x32xbf16>, vector<8x32xf32> -> vector<8x32xf32>
    %38 = arith.addf %31, %37 : vector<8x32xf32>
    %c0_16 = arith.constant 0 : index
    %c0_17 = arith.constant 0 : index
    %39 = vector.load %arg6[%c0_16, %c0_17] : memref<1x32xf32, #tpu.memory_space<vmem>>, vector<1x32xf32>
    %40 = vector.broadcast %39 : vector<1x32xf32> to vector<8x32xf32>
    %41 = arith.addf %38, %40 : vector<8x32xf32>
    %c0_18 = arith.constant 0 : index
    %c0_19 = arith.constant 0 : index
    %c0_20 = arith.constant 0 : index
    %42 = vector.load %arg7[%c0_18, %c0_19, %c0_20] : memref<1x8x32xf32, #tpu.memory_space<vmem>>, vector<1x8x32xf32>
    %43 = vector.shape_cast %42 : vector<1x8x32xf32> to vector<8x32xf32>
    %44 = vector.shape_cast %41 : vector<8x32xf32> to vector<1x8x32xf32>
    tpu.vector_store %arg7[%c0_18, %c0_19, %c0_20], %44 {strides = array<i32>} : memref<1x8x32xf32, #tpu.memory_space<vmem>>, vector<1x8x32xf32>,
    return
  }
  func.func @transform_0(%arg0: i32, %arg1: i32) -> (i32, i32, i32) {
    %c0_i32 = arith.constant 0 : i32
    %c0_i32_0 = arith.constant 0 : i32
    %c0_i32_1 = arith.constant 0 : i32
    return %arg0, %c0_i32, %c0_i32_0 : i32, i32, i32
  }
  func.func @transform_1(%arg0: i32, %arg1: i32) -> (i32, i32) {
    %c0_i32 = arith.constant 0 : i32
    %c0_i32_0 = arith.constant 0 : i32
    %c0_i32_1 = arith.constant 0 : i32
    return %c0_i32, %c0_i32_0 : i32, i32
  }
  func.func @transform_2(%arg0: i32, %arg1: i32) -> (i32, i32) {
    %c0_i32 = arith.constant 0 : i32
    %c0_i32_0 = arith.constant 0 : i32
    %c0_i32_1 = arith.constant 0 : i32
    return %c0_i32, %c0_i32_0 : i32, i32
  }
  func.func @transform_3(%arg0: i32, %arg1: i32) -> (i32, i32) {
    %c0_i32 = arith.constant 0 : i32
    %c0_i32_0 = arith.constant 0 : i32
    %c0_i32_1 = arith.constant 0 : i32
    return %c0_i32, %c0_i32_0 : i32, i32
  }
  func.func @transform_4(%arg0: i32, %arg1: i32) -> (i32, i32) {
    %c0_i32 = arith.constant 0 : i32
    %c0_i32_0 = arith.constant 0 : i32
    %c0_i32_1 = arith.constant 0 : i32
    return %c0_i32, %c0_i32_0 : i32, i32
  }
  func.func @transform_5(%arg0: i32, %arg1: i32) -> (i32, i32, i32) {
    %c0_i32 = arith.constant 0 : i32
    %c0_i32_0 = arith.constant 0 : i32
    return %arg0, %arg1, %c0_i32 : i32, i32, i32
  }
}

</mosaic_0001>

<llo_original>
// kernel: tpu_custom_call.1
$region0: #{tpu_custom_call.1}
  #allocation0 [shape = 'u32[]', space=smem, size = 0x4, offset = 0x4, fixed_abs, tag = 'smem constant byte address 0x4 - core index']
  #allocation1 [shape = 'u32[144,128]{1,0:T(1,128)}', space=vmem, size = 0x12000, scoped, tag = 'internal scratch']
  %s0 = inlined_call_operand.hbm [shape: f32[2,8,32], index: 0, kind: input, shape index: {}]
  %s1 = inlined_call_operand.hbm [shape: bf16[32,32], index: 1, kind: input, shape index: {}]
  %s2 = inlined_call_operand.hbm [shape: bf16[32,64], index: 2, kind: input, shape index: {}]
  %s3 = inlined_call_operand.hbm [shape: bf16[32,32], index: 3, kind: input, shape index: {}]
  %s4 = inlined_call_operand.vmem [shape: f32[1,32], index: 4, kind: input, shape index: {}]
  %s5 = inlined_call_operand.hbm [shape: f32[2,8,32], index: 5, kind: output, shape index: {}]
  %s6 = sld [smem:[#allocation0]]
  $region76: #{tpu_custom_call.1} parent=0
    _
  %s8 = ssub.s32 1, %s6
  %s9 = scalar_select 0, %s8, %s6
  $region1: #{tpu_custom_call.1} parent=0
    #allocation2 [shape = 'u8[8192]{0}', space=vmem, size = 0x2000, scoped, tag = 'input window, operand 0']
    #allocation3 [shape = 's32[2]{0}', space=sflag, size = 0x8, scoped, tag = 'scoped memory for tpu_custom_call.1']
    #allocation4 [shape = 's32[2]{0}', space=sflag, size = 0x8, scoped, tag = 'scoped memory for tpu_custom_call.1']
    #allocation5 [shape = 'u8[8192]{0}', space=vmem, size = 0x2000, scoped, tag = 'input window, operand 1, single buffered']
    #allocation6 [shape = 's32[1]{0}', space=sflag, size = 0x4, scoped, tag = 'scoped memory for tpu_custom_call.1']
    #allocation7 [shape = 'u8[8192]{0}', space=vmem, size = 0x2000, scoped, tag = 'input window, operand 2, single buffered']
    #allocation8 [shape = 'u8[8192]{0}', space=vmem, size = 0x2000, scoped, tag = 'input window, operand 3, single buffered']
    #allocation9 [shape = 's32[1]{0}', space=sflag, size = 0x4, scoped, tag = 'scoped memory for tpu_custom_call.1']
    #allocation10 [shape = 'u8[8192]{0}', space=vmem, size = 0x2000, scoped, tag = 'output window, operand 0']
    %10 = vsyncpa [#allocation3], 0
    %s11 = scalar_lea.sflag [#allocation3], 1
    %12 = vsyncpa %s11, 0
    %13 = vsyncpa [#allocation6], 0
    %14 = vsyncpa [#allocation9], 0
    %15 = vsyncpa [#allocation4], 0
    %s16 = scalar_lea.sflag [#allocation4], 1
    %17 = vsyncpa %s16, 0
    loop: start=0, step=1, limit=4
    $region2: #{tpu_custom_call.1} parent=1 // loop_pre_header
      _
    $region3: #{tpu_custom_call.1} parent=1 // loop_header
      %s19 = sphi 0, %s23
      %p20 = scmp.ge.s32.totalorder %s19, 4
      %s26 = sphi 0, %s38
      %s27 = sphi 0, %s34
      %s28 = sphi 0, %s26
      %s29 = sphi 0, %s27
      %s30 = sphi 0, %s28
      %s31 = sphi 0, %s29
      %s41 = sphi 0, %s43
      %s44 = sphi 0, %s41
      %s45 = sphi 0, %s44
      %s61 = sphi 0, %s45
      %s65 = sphi 0, %s65
      %s67 = sphi 0, %s65
      %s68 = sphi 0, %s67
      %s82 = sphi 0, %s68
      %s86 = sphi 0, %s86
      %s88 = sphi 0, %s86
      %s89 = sphi 0, %s88
      %s103 = sphi 0, %s89
      %s107 = sphi 0, %s107
      %s109 = sphi 0, %s107
      %s110 = sphi 0, %s109
      %s124 = sphi 0, %s110
      %s128 = sphi 0, %s128
      %s130 = sphi 0, %s128
      %s131 = sphi 0, %s130
      %s145 = sphi 0, %s131
      %s153 = sphi 0, %s155
      %s156 = sphi 0, %s153
      %s157 = sphi 0, %s156
      %s173 = sphi 0, %s157
    $region4: #{tpu_custom_call.1} parent=1 // loop_header_branch
      %22 = sbr.rel (%p20) target = $region8
    $region5: #{tpu_custom_call.1} parent=1 // loop_body
      %s24 = ssub.s32 %s19, 1
      %s25 = ssub.s32 %s19, 2
      %s32 = sadd.s32 1, %s27
      %p33 = scmp.ge.s32.totalorder %s32, 1
      %s34 = scalar_select %p33, 0, %s32
      %s35 = sadd.s32 1, %s26
      %s36 = scalar_select %p33, %s35, %s26
      %p37 = scmp.ge.s32.totalorder %s36, 2
      %s38 = scalar_select %p37, 0, %s36
      %s39 = ssub.s32 %s26, %s38
      %p40 = scmp.eq.s32.totalorder %s39, 0
      %s42 = sadd.s32 %s41, 1
      %s43 = scalar_select %p40, %s41, %s42
      %p46 = pneg %p40
      %p47 = scmp.eq.s32.totalorder %s19, 1
      %p48 = por %p46, %p47
      %p49 = scmp.ne.s32.totalorder %s41, %s44
      %p50 = scmp.eq.s32.totalorder %s19, 0
      %p51 = por %p49, %p50
      %p52 = scmp.ne.s32.totalorder %s41, %s44
      %p53 = scmp.eq.s32.totalorder %s24, 1
      %p54 = por %p52, %p53
      %p55 = scmp.ne.s32.totalorder %s44, %s45
      %p56 = scmp.eq.s32.totalorder %s24, 0
      %p57 = por %p55, %p56
      %p58 = scmp.ne.s32.totalorder %s44, %s45
      %p59 = scmp.eq.s32.totalorder %s25, 1
      %p60 = por %p58, %p59
      %p62 = scmp.ne.s32.totalorder %s45, %s61
      %p63 = scmp.eq.s32.totalorder %s25, 0
      %p64 = por %p62, %p63
      %s66 = sadd.s32 %s65, 1
      %p69 = scmp.eq.s32.totalorder %s19, 1
      %p70 = scmp.ne.s32.totalorder %s65, %s67
      %p71 = scmp.eq.s32.totalorder %s19, 0
      %p72 = por %p70, %p71
      %p73 = scmp.ne.s32.totalorder %s65, %s67
      %p74 = scmp.eq.s32.totalorder %s24, 1
      %p75 = por %p73, %p74
      %p76 = scmp.ne.s32.totalorder %s67, %s68
      %p77 = scmp.eq.s32.totalorder %s24, 0
      %p78 = por %p76, %p77
      %p79 = scmp.ne.s32.totalorder %s67, %s68
      %p80 = scmp.eq.s32.totalorder %s25, 1
      %p81 = por %p79, %p80
      %p83 = scmp.ne.s32.totalorder %s68, %s82
      %p84 = scmp.eq.s32.totalorder %s25, 0
      %p85 = por %p83, %p84
      %s87 = sadd.s32 %s86, 1
      %p90 = scmp.eq.s32.totalorder %s19, 1
      %p91 = scmp.ne.s32.totalorder %s86, %s88
      %p92 = scmp.eq.s32.totalorder %s19, 0
      %p93 = por %p91, %p92
      %p94 = scmp.ne.s32.totalorder %s86, %s88
      %p95 = scmp.eq.s32.totalorder %s24, 1
      %p96 = por %p94, %p95
      %p97 = scmp.ne.s32.totalorder %s88, %s89
      %p98 = scmp.eq.s32.totalorder %s24, 0
      %p99 = por %p97, %p98
      %p100 = scmp.ne.s32.totalorder %s88, %s89
      %p101 = scmp.eq.s32.totalorder %s25, 1
      %p102 = por %p100, %p101
      %p104 = scmp.ne.s32.totalorder %s89, %s103
      %p105 = scmp.eq.s32.totalorder %s25, 0
      %p106 = por %p104, %p105
      %s108 = sadd.s32 %s107, 1
      %p111 = scmp.eq.s32.totalorder %s19, 1
      %p112 = scmp.ne.s32.totalorder %s107, %s109
      %p113 = scmp.eq.s32.totalorder %s19, 0
      %p114 = por %p112, %p113
      %p115 = scmp.ne.s32.totalorder %s107, %s109
      %p116 = scmp.eq.s32.totalorder %s24, 1
      %p117 = por %p115, %p116
      %p118 = scmp.ne.s32.totalorder %s109, %s110
      %p119 = scmp.eq.s32.totalorder %s24, 0
      %p120 = por %p118, %p119
      %p121 = scmp.ne.s32.totalorder %s109, %s110
      %p122 = scmp.eq.s32.totalorder %s25, 1
      %p123 = por %p121, %p122
      %p125 = scmp.ne.s32.totalorder %s110, %s124
      %p126 = scmp.eq.s32.totalorder %s25, 0
      %p127 = por %p125, %p126
      %s129 = sadd.s32 %s128, 1
      %p132 = scmp.eq.s32.totalorder %s19, 1
      %p133 = scmp.ne.s32.totalorder %s128, %s130
      %p134 = scmp.eq.s32.totalorder %s19, 0
      %p135 = por %p133, %p134
      %p136 = scmp.ne.s32.totalorder %s128, %s130
      %p137 = scmp.eq.s32.totalorder %s24, 1
      %p138 = por %p136, %p137
      %p139 = scmp.ne.s32.totalorder %s130, %s131
      %p140 = scmp.eq.s32.totalorder %s24, 0
      %p141 = por %p139, %p140
      %p142 = scmp.ne.s32.totalorder %s130, %s131
      %p143 = scmp.eq.s32.totalorder %s25, 1
      %p144 = por %p142, %p143
      %p146 = scmp.ne.s32.totalorder %s131, %s145
      %p147 = scmp.eq.s32.totalorder %s25, 0
      %p148 = por %p146, %p147
      %s149 = ssub.s32 %s26, %s38
      %s150 = ssub.s32 %s27, %s34
      %s151 = sor.u32 %s149, %s150
      %p152 = scmp.eq.s32.totalorder %s151, 0
      %s154 = sadd.s32 %s153, 1
      %s155 = scalar_select %p152, %s153, %s154
      %p158 = pneg %p152
      %p159 = scmp.eq.s32.totalorder %s19, 1
      %p160 = por %p158, %p159
      %p161 = scmp.ne.s32.totalorder %s153, %s156
      %p162 = scmp.eq.s32.totalorder %s19, 0
      %p163 = por %p161, %p162
      %p164 = scmp.ne.s32.totalorder %s153, %s156
      %p165 = scmp.eq.s32.totalorder %s24, 1
      %p166 = por %p164, %p165
      %p167 = scmp.ne.s32.totalorder %s156, %s157
      %p168 = scmp.eq.s32.totalorder %s24, 0
      %p169 = por %p167, %p168
      %p170 = scmp.ne.s32.totalorder %s156, %s157
      %p171 = scmp.eq.s32.totalorder %s25, 1
      %p172 = por %p170, %p171
      %p174 = scmp.ne.s32.totalorder %s157, %s173
      %p175 = scmp.eq.s32.totalorder %s25, 0
      %p176 = por %p174, %p175
      %p177 = scmp.le.s32.totalorder 1, %s19
      %p178 = scmp.lt.s32.totalorder %s19, 3
      %p179 = pnand %p177, %p178
      %p180 = pneg %p179
      // Predicated region
      $region9: #{tpu_custom_call.1} parent=5 // pred_check
        _
      $region10: #{tpu_custom_call.1} parent=5 // pred_check_branch
        %182 = sbr.rel (%p179) target = $region12
      $region11: #{tpu_custom_call.1} parent=5 // pred_region
        %s183 = ssub.s32 %s19, 1
        // Predicated region
        $region13: #{tpu_custom_call.1} parent=11 // pred_check
          %p184 = pneg %p78
        $region14: #{tpu_custom_call.1} parent=11 // pred_check_branch
          %186 = sbr.rel (%p184) target = $region16
        $region15: #{tpu_custom_call.1} parent=11 // pred_region
          %s188 = ssub.s32 256, 256
          %189 = vsyncadd [#allocation6], %s188
          %s190 = sshll.u32 [#allocation5], 4
          %s191 = int_to_ptr.vmem [resolvable:$true] %s190
          %196 = dma.hbm_to_vmem [thread:$0]  %s1, 256, %s191, [#allocation6], 64, 64, 4
        $region16: #{tpu_custom_call.1} parent=11 // pred_fallthru
          _
        // Predicated region
        $region17: #{tpu_custom_call.1} parent=11 // pred_check
          %p197 = pneg %p99
        $region18: #{tpu_custom_call.1} parent=11 // pred_check_branch
          %199 = sbr.rel (%p197) target = $region20
        $region19: #{tpu_custom_call.1} parent=11 // pred_region
          %s201 = ssub.s32 256, 256
          %202 = vsyncadd [#allocation6], %s201
          %s203 = sshll.u32 [#allocation7], 4
          %s204 = int_to_ptr.vmem [resolvable:$true] %s203
          %209 = dma.hbm_to_vmem [thread:$0]  %s2, 256, %s204, [#allocation6], 64, 64, 4
        $region20: #{tpu_custom_call.1} parent=11 // pred_fallthru
          _
        // Predicated region
        $region21: #{tpu_custom_call.1} parent=11 // pred_check
          %p210 = pneg %p120
        $region22: #{tpu_custom_call.1} parent=11 // pred_check_branch
          %212 = sbr.rel (%p210) target = $region24
        $region23: #{tpu_custom_call.1} parent=11 // pred_region
          %s214 = ssub.s32 256, 256
          %215 = vsyncadd [#allocation9], %s214
          %s216 = sshll.u32 [#allocation8], 4
          %s217 = int_to_ptr.vmem [resolvable:$true] %s216
          %222 = dma.hbm_to_vmem [thread:$0]  %s3, 256, %s217, [#allocation9], 64, 64, 4
        $region24: #{tpu_custom_call.1} parent=11 // pred_fallthru
          _
        // Predicated region
        $region25: #{tpu_custom_call.1} parent=11 // pred_check
          %p223 = pneg %p141
        $region26: #{tpu_custom_call.1} parent=11 // pred_check_branch
          %225 = sbr.rel (%p223) target = $region28
        $region27: #{tpu_custom_call.1} parent=11 // pred_region
          _
        $region28: #{tpu_custom_call.1} parent=11 // pred_fallthru
          _
      $region12: #{tpu_custom_call.1} parent=5 // pred_fallthru
        _
      %p226 = scmp.lt.s32.totalorder %s19, 2
      // Predicated region
      $region29: #{tpu_custom_call.1} parent=5 // pred_check
        %p227 = pneg %p226
      $region30: #{tpu_custom_call.1} parent=5 // pred_check_branch
        %229 = sbr.rel (%p227) target = $region32
      $region31: #{tpu_custom_call.1} parent=5 // pred_region
        // Predicated region
        $region33: #{tpu_custom_call.1} parent=31 // pred_check
          %p230 = pneg %p51
        $region34: #{tpu_custom_call.1} parent=31 // pred_check_branch
          %232 = sbr.rel (%p230) target = $region36
        $region35: #{tpu_custom_call.1} parent=31 // pred_region
          %s233 = sand.u32 %s41, 1
          %s234 = scalar_lea.sflag [#allocation3], %s233
          %s235 = sand.u32 %s41, 1
          %s236 = smul.addr %s235, 8
          %s237 = scalar_lea.vmem [#allocation2], %s236
          %s239 = ssub.s32 128, 128
          %240 = vsyncadd %s234, %s239
          %s241 = smul.addr %s26, 128
          %s242 = scalar_lea.hbm %s0, %s241
          %s244 = sshll.u32 %s237, 4
          %s245 = int_to_ptr.vmem [resolvable:$true] %s244
          %247 = dma.hbm_to_vmem [thread:$0]  %s242, 128, %s245, %s234
        $region36: #{tpu_custom_call.1} parent=31 // pred_fallthru
          _
      $region32: #{tpu_custom_call.1} parent=5 // pred_fallthru
        _
      %p248 = scmp.le.s32.totalorder 1, %s19
      %p249 = scmp.lt.s32.totalorder %s19, 3
      %p250 = pnand %p248, %p249
      %p251 = pneg %p250
      // Predicated region
      $region37: #{tpu_custom_call.1} parent=5 // pred_check
        _
      $region38: #{tpu_custom_call.1} parent=5 // pred_check_branch
        %253 = sbr.rel (%p250) target = $region40
      $region39: #{tpu_custom_call.1} parent=5 // pred_region
        %s254 = ssub.s32 %s19, 1
        %s255 = sand.u32 %s44, 1
        %s256 = scalar_lea.sflag [#allocation3], %s255
        %s257 = sand.u32 %s44, 1
        %s258 = smul.addr %s257, 8
        %s259 = scalar_lea.vmem [#allocation2], %s258
        // Predicated region
        $region41: #{tpu_custom_call.1} parent=39 // pred_check
          %p260 = pneg %p57
        $region42: #{tpu_custom_call.1} parent=39 // pred_check_branch
          %262 = sbr.rel (%p260) target = $region44
        $region43: #{tpu_custom_call.1} parent=39 // pred_region
          %263 = dma.done %s256, 128
        $region44: #{tpu_custom_call.1} parent=39 // pred_fallthru
          _
        // Predicated region
        $region45: #{tpu_custom_call.1} parent=39 // pred_check
          %p264 = pneg %p78
        $region46: #{tpu_custom_call.1} parent=39 // pred_check_branch
          %266 = sbr.rel (%p264) target = $region48
        $region47: #{tpu_custom_call.1} parent=39 // pred_region
          %267 = dma.done [#allocation6], 256
        $region48: #{tpu_custom_call.1} parent=39 // pred_fallthru
          _
        // Predicated region
        $region49: #{tpu_custom_call.1} parent=39 // pred_check
          %p268 = pneg %p99
        $region50: #{tpu_custom_call.1} parent=39 // pred_check_branch
          %270 = sbr.rel (%p268) target = $region52
        $region51: #{tpu_custom_call.1} parent=39 // pred_region
          %271 = dma.done [#allocation6], 256
        $region52: #{tpu_custom_call.1} parent=39 // pred_fallthru
          _
        // Predicated region
        $region53: #{tpu_custom_call.1} parent=39 // pred_check
          %p272 = pneg %p120
        $region54: #{tpu_custom_call.1} parent=39 // pred_check_branch
          %274 = sbr.rel (%p272) target = $region56
        $region55: #{tpu_custom_call.1} parent=39 // pred_region
          %275 = dma.done [#allocation9], 256
        $region56: #{tpu_custom_call.1} parent=39 // pred_fallthru
          _
        %s276 = sand.u32 %s44, 1
        %s277 = scalar_lea.sflag [#allocation3], %s276
        %s278 = sand.u32 %s44, 1
        %s279 = smul.addr %s278, 8
        %s280 = scalar_lea.vmem [#allocation2], %s279
        %p281 = pneg %p57
        %p282 = pneg %p54
        %p283 = pneg %p78
        %p284 = pneg %p75
        %p285 = pneg %p99
        %p286 = pneg %p96
        %p287 = pneg %p120
        %p288 = pneg %p117
        %p289 = pneg %p141
        %p290 = pneg %p138
        %p291 = pneg %p169
        %p292 = pneg %p166
        %s293 = sand.u32 %s156, 1
        %s294 = scalar_lea.sflag [#allocation4], %s293
        %s295 = sand.u32 %s156, 1
        %s296 = smul.addr %s295, 8
        %s297 = scalar_lea.vmem [#allocation10], %s296
        %s299 = smul.u32 %s29, 8
        %s300 = scalar_lea.vmem %s259, %s299 [#allocation2]
        %v301 = vld [vmem:[%s300] sm:$0xff]
        %v302 = vpack.c.bf16 %v301, %v301
        %v303 = vld [vmem:[#allocation5] sm:$0xf]
        %v304 = vld [vmem:[#allocation5 + $0x4] sm:$0xf]
        %v305 = vld [vmem:[#allocation5 + $0x8] sm:$0xf]
        %v306 = vld [vmem:[#allocation5 + $0xc] sm:$0xf]
        %v311 = vunpack.c.l.b16 %v303
        %v312 = vunpack.c.l.b16 %v304
        %v313 = vunpack.c.l.b16 %v305
        %v314 = vunpack.c.l.b16 %v306
        %v315 = vpack.c.b16 %v312, %v311
        %v316 = vpack.c.b16 %v314, %v313
        %vm319 = vcmask 261120
        %v321 = vsel %vm319, %v302, 0
        %323 = vmatprep.subr.bf16.mxu0 0
        %324 = vmatpush1.bf16.msra.mxu0 0
        %325 = vmatprep.subr.bf16.mxu0 0
        %326 = vmatpush1.bf16.msra.mxu0 0
        %327 = vmatprep.subr.bf16.mxu0 0
        %328 = vmatpush1.bf16.msra.mxu0 0
        %329 = vmatprep.subr.bf16.mxu0 0
        %330 = vmatpush1.bf16.msra.mxu0 0
        %331 = vmatprep.subr.bf16.mxu0 0
        %332 = vmatpush1.bf16.msra.mxu0 0
        %333 = vmatprep.subr.bf16.mxu0 0
        %334 = vmatpush1.bf16.msra.mxu0 0
        %335 = vmatprep.subr.bf16.mxu0 0
        %336 = vmatpush1.bf16.msra.mxu0 %v316
        %337 = vmatprep.subr.bf16.mxu0 0
        %338 = vmatpush1.bf16.msra.mxu0 %v315
        %339 = vmatprep.subr.bf16.mxu0 0
        %340 = vmatpush2.bf16.msra.mxu0 0
        %341 = vmatprep.subr.bf16.mxu0 0
        %342 = vmatpush2.bf16.msra.mxu0 0
        %343 = vmatprep.subr.bf16.mxu0 0
        %344 = vmatpush2.bf16.msra.mxu0 0
        %345 = vmatprep.subr.bf16.mxu0 0
        %346 = vmatpush2.bf16.msra.mxu0 0
        %347 = vmatprep.subr.bf16.mxu0 0
        %348 = vmatpush2.bf16.msra.mxu0 0
        %349 = vmatprep.subr.bf16.mxu0 0
        %350 = vmatpush2.bf16.msra.mxu0 0
        %351 = vmatprep.subr.bf16.mxu0 0
        %352 = vmatpush2.bf16.msra.mxu0 0
        %353 = vmatprep.subr.bf16.mxu0 0
        %354 = vmatpush2.bf16.msra.mxu0 0
        %355 = vmatprep.mubr.bf16.mxu0 0
        %356 = vmatmul.mubr.bf16.gmra.mxu0 %v321
        %v357 = vpop.f32.mrf.mxu0
        %v358 = vadd.f32 0.0, %v357
        %v359 = vpop.f32.mrf.mxu0
        %v360 = vpop.f32.mrf.mxu0
        %v361 = vpop.f32.mrf.mxu0
        %362 = vdwg.mxu0
        %v363 = vpack.c.bf16 %v358, %v358
        %v364 = vlaneseq
        %v365 = vshrl.u32 %v364, 7
        %v366 = vstv %s299
        %v367 = vadd.s32 %v366, %v365
        %s368 = sadd.s32 %s29, 1
        // While loop
        $region57: #{tpu_custom_call.1} parent=39 // loop_pre_header
          _
        $region58: #{tpu_custom_call.1} parent=39 // loop_header
          %s370 = sphi 0, %s372
          %p371 = scmp.ge.s32.totalorder %s370, %s368
          %v375 = vphi -1e+30, %v502
          %v376 = vphi 0.0, %v513
          %v377 = vphi 0.0, %v566
          %v378 = vphi -1e+30, %v622
          %v379 = vphi 0.0, %v633
          %v380 = vphi 0.0, %v684
        $region59: #{tpu_custom_call.1} parent=39 // loop_header_branch
          %374 = sbr.rel (%p371) target = $region63
        $region60: #{tpu_custom_call.1} parent=39 // loop_body
          %s381 = smul.u32 %s370, 8
          %s382 = scalar_lea.vmem %s259, %s381 [#allocation2]
          %v383 = vld [vmem:[%s382] sm:$0xff]
          %v384 = vpack.c.bf16 %v383, %v383
          %v385 = vld [vmem:[#allocation7] sm:$0xf]
          %v386 = vld [vmem:[#allocation7 + $0x4] sm:$0xf]
          %v387 = vld [vmem:[#allocation7 + $0x8] sm:$0xf]
          %v388 = vld [vmem:[#allocation7 + $0xc] sm:$0xf]
          %v393 = vunpack.c.l.b16 %v385
          %v394 = vunpack.c.l.b16 %v386
          %v395 = vunpack.c.l.b16 %v387
          %v396 = vunpack.c.l.b16 %v388
          %v397 = vpack.c.b16 %v394, %v393
          %v398 = vpack.c.b16 %v396, %v395
          %v402 = vsel %vm319, %v384, 0
          %404 = vmatprep.subr.bf16.mxu0 0
          %405 = vmatpush1.bf16.msra.mxu0 0
          %406 = vmatprep.subr.bf16.mxu0 0
          %407 = vmatpush1.bf16.msra.mxu0 0
          %408 = vmatprep.subr.bf16.mxu0 0
          %409 = vmatpush1.bf16.msra.mxu0 0
          %410 = vmatprep.subr.bf16.mxu0 0
          %411 = vmatpush1.bf16.msra.mxu0 0
          %412 = vmatprep.subr.bf16.mxu0 0
          %413 = vmatpush1.bf16.msra.mxu0 0
          %414 = vmatprep.subr.bf16.mxu0 0
          %415 = vmatpush1.bf16.msra.mxu0 0
          %416 = vmatprep.subr.bf16.mxu0 0
          %417 = vmatpush1.bf16.msra.mxu0 %v398
          %418 = vmatprep.subr.bf16.mxu0 0
          %419 = vmatpush1.bf16.msra.mxu0 %v397
          %420 = vmatprep.subr.bf16.mxu0 0
          %421 = vmatpush2.bf16.msra.mxu0 0
          %422 = vmatprep.subr.bf16.mxu0 0
          %423 = vmatpush2.bf16.msra.mxu0 0
          %424 = vmatprep.subr.bf16.mxu0 0
          %425 = vmatpush2.bf16.msra.mxu0 0
          %426 = vmatprep.subr.bf16.mxu0 0
          %427 = vmatpush2.bf16.msra.mxu0 0
          %428 = vmatprep.subr.bf16.mxu0 0
          %429 = vmatpush2.bf16.msra.mxu0 0
          %430 = vmatprep.subr.bf16.mxu0 0
          %431 = vmatpush2.bf16.msra.mxu0 0
          %432 = vmatprep.subr.bf16.mxu0 0
          %433 = vmatpush2.bf16.msra.mxu0 0
          %434 = vmatprep.subr.bf16.mxu0 0
          %435 = vmatpush2.bf16.msra.mxu0 0
          %436 = vmatprep.mubr.bf16.mxu0 0
          %437 = vmatmul.mubr.bf16.gmra.mxu0 %v402
          %v438 = vpop.f32.mrf.mxu0
          %v439 = vadd.f32 0.0, %v438
          %v440 = vpop.f32.mrf.mxu0
          %v441 = vpop.f32.mrf.mxu0
          %v442 = vpop.f32.mrf.mxu0
          %443 = vdwg.mxu0
          %v444 = vpack.c.bf16 %v439, %v439
          %v445 = vlaneseq
          %v446 = vand.u32 %v445, 127
          %v447 = vstv %s381
          %v448 = vadd.s32 %v447, %v446
          %vm449 = vcmp.gt.s32.totalorder %v448, %v367
          %vm450 = vcmask 130048
          %v452 = vsel %vm450, %v363, 0
          %v455 = vsel %vm450, %v444, 0
          %457 = vmatprep.subr.bf16.mxu0 0
          %458 = vmatpush1.bf16.xpose.msra.mxu0 0
          %459 = vmatprep.subr.bf16.mxu0 0
          %460 = vmatpush1.bf16.xpose.msra.mxu0 0
          %461 = vmatprep.subr.bf16.mxu0 0
          %462 = vmatpush1.bf16.xpose.msra.mxu0 0
          %463 = vmatprep.subr.bf16.mxu0 0
          %464 = vmatpush1.bf16.xpose.msra.mxu0 0
          %465 = vmatprep.subr.bf16.mxu0 0
          %466 = vmatpush1.bf16.xpose.msra.mxu0 0
          %467 = vmatprep.subr.bf16.mxu0 0
          %468 = vmatpush1.bf16.xpose.msra.mxu0 0
          %469 = vmatprep.subr.bf16.mxu0 0
          %470 = vmatpush1.bf16.xpose.msra.mxu0 0
          %471 = vmatprep.subr.bf16.mxu0 0
          %472 = vmatpush1.bf16.xpose.msra.mxu0 %v455
          %473 = vmatprep.subr.bf16.mxu0 0
          %474 = vmatpush2.bf16.xpose.msra.mxu0 0
          %475 = vmatprep.subr.bf16.mxu0 0
          %476 = vmatpush2.bf16.xpose.msra.mxu0 0
          %477 = vmatprep.subr.bf16.mxu0 0
          %478 = vmatpush2.bf16.xpose.msra.mxu0 0
          %479 = vmatprep.subr.bf16.mxu0 0
          %480 = vmatpush2.bf16.xpose.msra.mxu0 0
          %481 = vmatprep.subr.bf16.mxu0 0
          %482 = vmatpush2.bf16.xpose.msra.mxu0 0
          %483 = vmatprep.subr.bf16.mxu0 0
          %484 = vmatpush2.bf16.xpose.msra.mxu0 0
          %485 = vmatprep.subr.bf16.mxu0 0
          %486 = vmatpush2.bf16.xpose.msra.mxu0 0
          %487 = vmatprep.subr.bf16.mxu0 0
          %488 = vmatpush2.bf16.xpose.msra.mxu0 0
          %489 = vmatprep.mubr.bf16.mxu0 0
          %490 = vmatmul.mubr.bf16.gmra.mxu0 %v452
          %v491 = vpop.f32.mrf.mxu0
          %v492 = vadd.f32 0.0, %v491
          %v493 = vpop.f32.mrf.mxu0
          %v494 = vpop.f32.mrf.mxu0
          %v495 = vpop.f32.mrf.mxu0
          %496 = vdwg.mxu0
          %v497 = vsel %vm449, -1e+30, %v492
          %vm498 = vcmask 64512
          %v499 = vsel %vm498, %v497, -inf
          %500 = vmax.xlane.f32.xlu0 %v499
          %v501 = vpop.xlane.xlu0 %500
          %v502 = vmax.f32 %v375, %v501
          %v503 = vsub.f32 %v375, %v502
          %v504 = vmul.f32 %v503, 1.442695
          %v505 = vpow.pop %v504
          %v506 = vsub.f32 %v497, %v502
          %v507 = vmul.f32 %v506, 1.442695
          %v508 = vpow.pop %v507
          %v509 = vmul.f32 %v505, %v376
          %v510 = vsel %vm498, %v508, 0.0
          %511 = vadd.xlane.f32.xlu0 %v510
          %v512 = vpop.xlane.xlu0 %511
          %v513 = vadd.f32 %v509, %v512
          %v514 = vmul.f32 %v505, %v377
          %v515 = vpack.c.bf16 %v508, %v508
          %517 = vrot.lane.b32.xlu0 %v444, 96
          %v518 = vpop.permute.xlu0 %517
          %v520 = vsel %vm498, %v515, 0
          %vm522 = vcmask 1043456
          %v524 = vsel %vm522, %v518, 0
          %526 = vmatprep.subr.bf16.mxu0 0
          %527 = vmatpush1.bf16.msra.mxu0 0
          %528 = vmatprep.subr.bf16.mxu0 0
          %529 = vmatpush1.bf16.msra.mxu0 0
          %530 = vmatprep.subr.bf16.mxu0 0
          %531 = vmatpush1.bf16.msra.mxu0 0
          %532 = vmatprep.subr.bf16.mxu0 0
          %533 = vmatpush1.bf16.msra.mxu0 0
          %534 = vmatprep.subr.bf16.mxu0 0
          %535 = vmatpush1.bf16.msra.mxu0 0
          %536 = vmatprep.subr.bf16.mxu0 0
          %537 = vmatpush1.bf16.msra.mxu0 0
          %538 = vmatprep.subr.bf16.mxu0 0
          %539 = vmatpush1.bf16.msra.mxu0 0
          %540 = vmatprep.subr.bf16.mxu0 0
          %541 = vmatpush1.bf16.msra.mxu0 %v524
          %542 = vmatprep.subr.bf16.mxu0 0
          %543 = vmatpush2.bf16.msra.mxu0 0
          %544 = vmatprep.subr.bf16.mxu0 0
          %545 = vmatpush2.bf16.msra.mxu0 0
          %546 = vmatprep.subr.bf16.mxu0 0
          %547 = vmatpush2.bf16.msra.mxu0 0
          %548 = vmatprep.subr.bf16.mxu0 0
          %549 = vmatpush2.bf16.msra.mxu0 0
          %550 = vmatprep.subr.bf16.mxu0 0
          %551 = vmatpush2.bf16.msra.mxu0 0
          %552 = vmatprep.subr.bf16.mxu0 0
          %553 = vmatpush2.bf16.msra.mxu0 0
          %554 = vmatprep.subr.bf16.mxu0 0
          %555 = vmatpush2.bf16.msra.mxu0 0
          %556 = vmatprep.subr.bf16.mxu0 0
          %557 = vmatpush2.bf16.msra.mxu0 0
          %558 = vmatprep.mubr.bf16.mxu0 0
          %559 = vmatmul.mubr.bf16.gmra.mxu0 %v520
          %v560 = vpop.f32.mrf.mxu0
          %v561 = vadd.f32 0.0, %v560
          %v562 = vpop.f32.mrf.mxu0
          %v563 = vpop.f32.mrf.mxu0
          %v564 = vpop.f32.mrf.mxu0
          %565 = vdwg.mxu0
          %v566 = vadd.f32 %v514, %v561
          %568 = vrot.lane.b32.xlu0 %v363, 112
          %v569 = vpop.permute.xlu0 %568
          %570 = vrot.lane.b32.xlu0 %v444, 112
          %v571 = vpop.permute.xlu0 %570
          %v573 = vsel %vm450, %v569, 0
          %v576 = vsel %vm450, %v571, 0
          %578 = vmatprep.subr.bf16.mxu0 0
          %579 = vmatpush1.bf16.xpose.msra.mxu0 0
          %580 = vmatprep.subr.bf16.mxu0 0
          %581 = vmatpush1.bf16.xpose.msra.mxu0 0
          %582 = vmatprep.subr.bf16.mxu0 0
          %583 = vmatpush1.bf16.xpose.msra.mxu0 0
          %584 = vmatprep.subr.bf16.mxu0 0
          %585 = vmatpush1.bf16.xpose.msra.mxu0 0
          %586 = vmatprep.subr.bf16.mxu0 0
          %587 = vmatpush1.bf16.xpose.msra.mxu0 0
          %588 = vmatprep.subr.bf16.mxu0 0
          %589 = vmatpush1.bf16.xpose.msra.mxu0 0
          %590 = vmatprep.subr.bf16.mxu0 0
          %591 = vmatpush1.bf16.xpose.msra.mxu0 0
          %592 = vmatprep.subr.bf16.mxu0 0
          %593 = vmatpush1.bf16.xpose.msra.mxu0 %v576
          %594 = vmatprep.subr.bf16.mxu0 0
          %595 = vmatpush2.bf16.xpose.msra.mxu0 0
          %596 = vmatprep.subr.bf16.mxu0 0
          %597 = vmatpush2.bf16.xpose.msra.mxu0 0
          %598 = vmatprep.subr.bf16.mxu0 0
          %599 = vmatpush2.bf16.xpose.msra.mxu0 0
          %600 = vmatprep.subr.bf16.mxu0 0
          %601 = vmatpush2.bf16.xpose.msra.mxu0 0
          %602 = vmatprep.subr.bf16.mxu0 0
          %603 = vmatpush2.bf16.xpose.msra.mxu0 0
          %604 = vmatprep.subr.bf16.mxu0 0
          %605 = vmatpush2.bf16.xpose.msra.mxu0 0
          %606 = vmatprep.subr.bf16.mxu0 0
          %607 = vmatpush2.bf16.xpose.msra.mxu0 0
          %608 = vmatprep.subr.bf16.mxu0 0
          %609 = vmatpush2.bf16.xpose.msra.mxu0 0
          %610 = vmatprep.mubr.bf16.mxu0 0
          %611 = vmatmul.mubr.bf16.gmra.mxu0 %v573
          %v612 = vpop.f32.mrf.mxu0
          %v613 = vadd.f32 0.0, %v612
          %v614 = vpop.f32.mrf.mxu0
          %v615 = vpop.f32.mrf.mxu0
          %v616 = vpop.f32.mrf.mxu0
          %617 = vdwg.mxu0
          %v618 = vsel %vm449, -1e+30, %v613
          %v619 = vsel %vm498, %v618, -inf
          %620 = vmax.xlane.f32.xlu0 %v619
          %v621 = vpop.xlane.xlu0 %620
          %v622 = vmax.f32 %v378, %v621
          %v623 = vsub.f32 %v378, %v622
          %v624 = vmul.f32 %v623, 1.442695
          %v625 = vpow.pop %v624
          %v626 = vsub.f32 %v618, %v622
          %v627 = vmul.f32 %v626, 1.442695
          %v628 = vpow.pop %v627
          %v629 = vmul.f32 %v625, %v379
          %v630 = vsel %vm498, %v628, 0.0
          %631 = vadd.xlane.f32.xlu0 %v630
          %v632 = vpop.xlane.xlu0 %631
          %v633 = vadd.f32 %v629, %v632
          %v634 = vmul.f32 %v625, %v380
          %v635 = vpack.c.bf16 %v628, %v628
          %636 = vrot.lane.b32.xlu0 %v444, 80
          %v637 = vpop.permute.xlu0 %636
          %v639 = vsel %vm498, %v635, 0
          %v642 = vsel %vm522, %v637, 0
          %644 = vmatprep.subr.bf16.mxu0 0
          %645 = vmatpush1.bf16.msra.mxu0 0
          %646 = vmatprep.subr.bf16.mxu0 0
          %647 = vmatpush1.bf16.msra.mxu0 0
          %648 = vmatprep.subr.bf16.mxu0 0
          %649 = vmatpush1.bf16.msra.mxu0 0
          %650 = vmatprep.subr.bf16.mxu0 0
          %651 = vmatpush1.bf16.msra.mxu0 0
          %652 = vmatprep.subr.bf16.mxu0 0
          %653 = vmatpush1.bf16.msra.mxu0 0
          %654 = vmatprep.subr.bf16.mxu0 0
          %655 = vmatpush1.bf16.msra.mxu0 0
          %656 = vmatprep.subr.bf16.mxu0 0
          %657 = vmatpush1.bf16.msra.mxu0 0
          %658 = vmatprep.subr.bf16.mxu0 0
          %659 = vmatpush1.bf16.msra.mxu0 %v642
          %660 = vmatprep.subr.bf16.mxu0 0
          %661 = vmatpush2.bf16.msra.mxu0 0
          %662 = vmatprep.subr.bf16.mxu0 0
          %663 = vmatpush2.bf16.msra.mxu0 0
          %664 = vmatprep.subr.bf16.mxu0 0
          %665 = vmatpush2.bf16.msra.mxu0 0
          %666 = vmatprep.subr.bf16.mxu0 0
          %667 = vmatpush2.bf16.msra.mxu0 0
          %668 = vmatprep.subr.bf16.mxu0 0
          %669 = vmatpush2.bf16.msra.mxu0 0
          %670 = vmatprep.subr.bf16.mxu0 0
          %671 = vmatpush2.bf16.msra.mxu0 0
          %672 = vmatprep.subr.bf16.mxu0 0
          %673 = vmatpush2.bf16.msra.mxu0 0
          %674 = vmatprep.subr.bf16.mxu0 0
          %675 = vmatpush2.bf16.msra.mxu0 0
          %676 = vmatprep.mubr.bf16.mxu0 0
          %677 = vmatmul.mubr.bf16.gmra.mxu0 %v639
          %v678 = vpop.f32.mrf.mxu0
          %v679 = vadd.f32 0.0, %v678
          %v680 = vpop.f32.mrf.mxu0
          %v681 = vpop.f32.mrf.mxu0
          %v682 = vpop.f32.mrf.mxu0
          %683 = vdwg.mxu0
          %v684 = vadd.f32 %v634, %v679
        $region61: #{tpu_custom_call.1} parent=39 // loop_footer
          %s372 = sadd.s32 %s370, 1
        $region62: #{tpu_custom_call.1} parent=39 // loop_footer_branch
          %369 = sbr.rel target = $region58
        $region63: #{tpu_custom_call.1} parent=39 // loop_exit
          _
        %v685 = vld [vmem:[#allocation8] sm:$0xf]
        %v686 = vld [vmem:[#allocation8 + $0x4] sm:$0xf]
        %v687 = vld [vmem:[#allocation8 + $0x8] sm:$0xf]
        %v688 = vld [vmem:[#allocation8 + $0xc] sm:$0xf]
        %v689 = vrcp.pop %v376
        %v690 = vmul.f32 %v377, %v689
        %v691 = vpack.c.bf16 %v690, %v690
        %v692 = vrcp.pop %v379
        %v693 = vmul.f32 %v380, %v692
        %v694 = vpack.c.bf16 %v693, %v693
        %v697 = vunpack.c.l.b16 %v687
        %v698 = vunpack.c.l.b16 %v688
        %v699 = vpack.c.b16 %v698, %v697
        %vm701 = vcmask 130048
        %v703 = vsel %vm701, %v694, 0
        %705 = vmatprep.subr.bf16.mxu0 0
        %706 = vmatpush1.bf16.msra.mxu0 0
        %707 = vmatprep.subr.bf16.mxu0 0
        %708 = vmatpush1.bf16.msra.mxu0 0
        %709 = vmatprep.subr.bf16.mxu0 0
        %710 = vmatpush1.bf16.msra.mxu0 0
        %711 = vmatprep.subr.bf16.mxu0 0
        %712 = vmatpush1.bf16.msra.mxu0 0
        %713 = vmatprep.subr.bf16.mxu0 0
        %714 = vmatpush1.bf16.msra.mxu0 0
        %715 = vmatprep.subr.bf16.mxu0 0
        %716 = vmatpush1.bf16.msra.mxu0 0
        %717 = vmatprep.subr.bf16.mxu0 0
        %718 = vmatpush1.bf16.msra.mxu0 0
        %719 = vmatprep.subr.bf16.mxu0 0
        %720 = vmatpush1.bf16.msra.mxu0 %v699
        %721 = vmatprep.subr.bf16.mxu0 0
        %722 = vmatpush2.bf16.msra.mxu0 0
        %723 = vmatprep.subr.bf16.mxu0 0
        %724 = vmatpush2.bf16.msra.mxu0 0
        %725 = vmatprep.subr.bf16.mxu0 0
        %726 = vmatpush2.bf16.msra.mxu0 0
        %727 = vmatprep.subr.bf16.mxu0 0
        %728 = vmatpush2.bf16.msra.mxu0 0
        %729 = vmatprep.subr.bf16.mxu0 0
        %730 = vmatpush2.bf16.msra.mxu0 0
        %731 = vmatprep.subr.bf16.mxu0 0
        %732 = vmatpush2.bf16.msra.mxu0 0
        %733 = vmatprep.subr.bf16.mxu0 0
        %734 = vmatpush2.bf16.msra.mxu0 0
        %735 = vmatprep.subr.bf16.mxu0 0
        %736 = vmatpush2.bf16.msra.mxu0 0
        %737 = vmatprep.mubr.bf16.mxu0 0
        %738 = vmatmul.mubr.bf16.gmra.mxu0 %v703
        %v739 = vpop.f32.mrf.mxu0
        %v740 = vadd.f32 0.0, %v739
        %v741 = vpop.f32.mrf.mxu0
        %v742 = vpop.f32.mrf.mxu0
        %v743 = vpop.f32.mrf.mxu0
        %744 = vdwg.mxu0
        %v747 = vunpack.c.l.b16 %v685
        %v748 = vunpack.c.l.b16 %v686
        %v749 = vpack.c.b16 %v748, %v747
        %v752 = vsel %vm701, %v691, 0
        %754 = vmatprep.subr.bf16.mxu0 0
        %755 = vmatpush1.bf16.msra.mxu0 0
        %756 = vmatprep.subr.bf16.mxu0 0
        %757 = vmatpush1.bf16.msra.mxu0 0
        %758 = vmatprep.subr.bf16.mxu0 0
        %759 = vmatpush1.bf16.msra.mxu0 0
        %760 = vmatprep.subr.bf16.mxu0 0
        %761 = vmatpush1.bf16.msra.mxu0 0
        %762 = vmatprep.subr.bf16.mxu0 0
        %763 = vmatpush1.bf16.msra.mxu0 0
        %764 = vmatprep.subr.bf16.mxu0 0
        %765 = vmatpush1.bf16.msra.mxu0 0
        %766 = vmatprep.subr.bf16.mxu0 0
        %767 = vmatpush1.bf16.msra.mxu0 0
        %768 = vmatprep.subr.bf16.mxu0 0
        %769 = vmatpush1.bf16.msra.mxu0 %v749
        %770 = vmatprep.subr.bf16.mxu0 0
        %771 = vmatpush2.bf16.msra.mxu0 0
        %772 = vmatprep.subr.bf16.mxu0 0
        %773 = vmatpush2.bf16.msra.mxu0 0
        %774 = vmatprep.subr.bf16.mxu0 0
        %775 = vmatpush2.bf16.msra.mxu0 0
        %776 = vmatprep.subr.bf16.mxu0 0
        %777 = vmatpush2.bf16.msra.mxu0 0
        %778 = vmatprep.subr.bf16.mxu0 0
        %779 = vmatpush2.bf16.msra.mxu0 0
        %780 = vmatprep.subr.bf16.mxu0 0
        %781 = vmatpush2.bf16.msra.mxu0 0
        %782 = vmatprep.subr.bf16.mxu0 0
        %783 = vmatpush2.bf16.msra.mxu0 0
        %784 = vmatprep.subr.bf16.mxu0 0
        %785 = vmatpush2.bf16.msra.mxu0 0
        %786 = vmatprep.mubr.bf16.mxu0 0
        %787 = vmatmul.mubr.bf16.gmra.mxu0 %v752
        %v788 = vpop.f32.mrf.mxu0
        %v789 = vadd.f32 %v740, %v788
        %v790 = vpop.f32.mrf.mxu0
        %v791 = vpop.f32.mrf.mxu0
        %v792 = vpop.f32.mrf.mxu0
        %793 = vdwg.mxu0
        %v794 = vld [vmem:[%s4] sm:$0x1]
        %v796 = vlaneseq
        %v797 = vshrl.u32 %v796, 7
        %v798 = vsub.s32 0, %v797
        %v799 = vrot.slane %v794, %v798
        %v801 = vadd.f32 %v789, %v799
        %802 = vst.msk [vmem:[%s297] sm:$0xff] %vm319, %v801
        %s803 = sand.u32 %s156, 1
        %s804 = scalar_lea.sflag [#allocation4], %s803
        %s805 = sand.u32 %s156, 1
        %s806 = smul.addr %s805, 8
        %s807 = scalar_lea.vmem [#allocation10], %s806
        // Predicated region
        $region64: #{tpu_custom_call.1} parent=39 // pred_check
          %p808 = pneg %p166
        $region65: #{tpu_custom_call.1} parent=39 // pred_check_branch
          %810 = sbr.rel (%p808) target = $region67
        $region66: #{tpu_custom_call.1} parent=39 // pred_region
          %s812 = ssub.s32 128, 128
          %813 = vsyncadd %s804, %s812
          %s814 = sadd.s32 %s29, %s28
          %s815 = smul.addr %s814, 128
          %s816 = scalar_lea.hbm %s5, %s815
          %s818 = sshll.u32 %s807, 4
          %s819 = int_to_ptr.vmem [resolvable:$true] %s818
          %821 = dma.vmem_to_hbm [thread:$0]  %s819, 128, %s816, %s804
        $region67: #{tpu_custom_call.1} parent=39 // pred_fallthru
          _
      $region40: #{tpu_custom_call.1} parent=5 // pred_fallthru
        _
      %p822 = scmp.le.s32.totalorder 2, %s19
      // Predicated region
      $region68: #{tpu_custom_call.1} parent=5 // pred_check
        %p823 = pneg %p822
      $region69: #{tpu_custom_call.1} parent=5 // pred_check_branch
        %825 = sbr.rel (%p823) target = $region71
      $region70: #{tpu_custom_call.1} parent=5 // pred_region
        %s826 = ssub.s32 %s19, 2
        // Predicated region
        $region72: #{tpu_custom_call.1} parent=70 // pred_check
          %p827 = pneg %p172
        $region73: #{tpu_custom_call.1} parent=70 // pred_check_branch
          %829 = sbr.rel (%p827) target = $region75
        $region74: #{tpu_custom_call.1} parent=70 // pred_region
          %s830 = sand.u32 %s157, 1
          %s831 = scalar_lea.sflag [#allocation4], %s830
          %s832 = sand.u32 %s157, 1
          %s833 = smul.addr %s832, 8
          %s834 = scalar_lea.vmem [#allocation10], %s833
          %835 = dma.done %s831, 128
        $region75: #{tpu_custom_call.1} parent=70 // pred_fallthru
          _
      $region71: #{tpu_custom_call.1} parent=5 // pred_fallthru
        _
    $region6: #{tpu_custom_call.1} parent=1 // loop_footer
      %s23 = sadd.s32 1, %s19
    $region7: #{tpu_custom_call.1} parent=1 // loop_footer_branch
      %18 = sbr.rel target = $region3
    $region8: #{tpu_custom_call.1} parent=1 // loop_exit
      _
    %836 = vsyncpa [#allocation3], 1
    %s837 = scalar_lea.sflag [#allocation3], 1
    %838 = vsyncpa %s837, 1
    %839 = vsyncpa [#allocation6], 1
    %840 = vsyncpa [#allocation9], 1
    %841 = vsyncpa [#allocation4], 1
    %s842 = scalar_lea.sflag [#allocation4], 1
    %843 = vsyncpa %s842, 1

</llo_original>
